<compile_context>
chip_gen: v5e
topology: v5e:2x2
jax: 0.10.0
libtpu: 0.0.40
codegen_flags: <defaults>
</compile_context>

<pallas_src>
import jax
import jax.numpy as jnp
from jax import lax
from jax.experimental import pallas as pl
from jax.experimental.pallas import tpu as pltpu


_NSEM = 8  # number of in-flight row DMAs in the gather ring


def _mf_word_embedding_kernel(ids_ref, emb_hbm_ref, w_ref, out_ref,
                              gbuf_ref, sems):
    """Grid step (i, j): tokens [i*TM, (i+1)*TM) x output cols [j*TD, (j+1)*TD).

    ids_ref:     (N_pad,) int32 SMEM   flattened token ids (scalar prefetch)
    emb_hbm_ref: (V, L)   HBM          reduced (embedding) matrix, never copied whole
    w_ref:       (L, TD)  VMEM         tile of the second (projection) matrix
    out_ref:     (TM, TD) VMEM         output tile
    gbuf_ref:    (TM, L)  VMEM scratch gathered embedding rows (reused across j)
    sems:        (NSEM,)  DMA sems     ring of in-flight row copies
    """
    tm = gbuf_ref.shape[0]
    tok_base = pl.program_id(0) * tm

    def row_copy(t, slot):
        idx = ids_ref[tok_base + t]
        return pltpu.make_async_copy(
            emb_hbm_ref.at[pl.ds(idx, 1), :],
            gbuf_ref.at[pl.ds(t, 1), :],
            sems.at[slot])

    # Gather the TM embedding rows once per token block.  The scratch buffer
    # persists across the inner ("arbitrary") D-tile axis, so j > 0 steps
    # reuse it without re-fetching.
    @pl.when(pl.program_id(1) == 0)
    def _gather():
        nsem = min(_NSEM, tm)
        for t in range(nsem):                       # prime the DMA ring
            row_copy(t, t).start()

        def body(t, carry):
            slot = t % nsem
            row_copy(t, slot).wait()                # row t is now in gbuf

            @pl.when(t + nsem < tm)
            def _():
                row_copy(t + nsem, slot).start()    # keep the ring full

            return carry

        lax.fori_loop(0, tm, body, 0)

    # (TM, L) @ (L, TD) projection on the MXU.
    out_ref[...] = jnp.dot(
        gbuf_ref[...], w_ref[...],
        preferred_element_type=jnp.float32).astype(out_ref.dtype)


def _round_up(x, m):
    return ((x + m - 1) // m) * m


def _pick_d_tile(d, preferred=256):
    """Lane-dense D tile: full D if small, else the largest 128-multiple divisor."""
    if d <= preferred:
        return d
    for td in range(preferred, 127, -128):
        if d % td == 0:
            return td
    return d  # fall back to untiled D


def mf_word_embedding(input_ids, reduced_matrix, second_matrix, *, tm=256, td=None):
    """Pallas implementation of MFWordEmbeddingModule.forward.

    input_ids:      (B, S) integer token ids
    reduced_matrix: (V, L) embedding (first SVD) factor
    second_matrix:  (L, D) projection (second SVD) factor
    returns:        (B, S, D)
    """
    B, S = input_ids.shape
    V, L = reduced_matrix.shape
    L2, D = second_matrix.shape
    assert L == L2, "latent dims must match"

    N = B * S
    # Fixed, MXU-aligned token tile (never tm = N); shrink for tiny inputs.
    tm = min(tm, _round_up(N, 8))
    n_pad = _round_up(N, tm)

    ids_flat = input_ids.reshape(-1).astype(jnp.int32)
    if n_pad != N:
        # Padding tokens gather row 0; their output rows are sliced off below.
        ids_flat = jnp.pad(ids_flat, (0, n_pad - N))

    if td is None:
        td = _pick_d_tile(D)
    assert D % td == 0, "output tile must divide D"

    grid = (n_pad // tm, D // td)
    dtype = reduced_matrix.dtype
    itemsize = jnp.dtype(dtype).itemsize

    # Rough lane-padded VMEM budget (double-buffered w/out tiles + gather
    # scratch) with headroom; the HBM-resident table never counts against it.
    lane = lambda x: _round_up(x, 128)
    sub = lambda x: _round_up(x, 8)
    vmem_needed = itemsize * (2 * sub(L) * lane(td)
                              + 2 * sub(tm) * lane(td)
                              + sub(tm) * lane(L))
    vmem_limit = int(max(2 * vmem_needed + (2 << 20), 16 << 20))

    out_flat = pl.pallas_call(
        _mf_word_embedding_kernel,
        out_shape=jax.ShapeDtypeStruct((n_pad, D), dtype),
        grid_spec=pltpu.PrefetchScalarGridSpec(
            num_scalar_prefetch=1,                       # ids -> SMEM
            grid=grid,
            in_specs=[
                pl.BlockSpec(memory_space=pl.ANY),       # (V, L) table stays in HBM
                pl.BlockSpec((L, td), lambda i, j, ids: (0, j)),
            ],
            out_specs=pl.BlockSpec((tm, td), lambda i, j, ids: (i, j)),
            scratch_shapes=[
                pltpu.VMEM((tm, L), dtype),              # gathered rows
                pltpu.SemaphoreType.DMA((_NSEM,)),       # gather DMA ring
            ],
        ),
        compiler_params=pltpu.CompilerParams(
            dimension_semantics=("parallel", "arbitrary"),
            vmem_limit_bytes=vmem_limit),
    )(ids_flat, reduced_matrix, second_matrix)

    return out_flat[:N].reshape(B, S, D)


def mf_word_embedding_ref(input_ids, reduced_matrix, second_matrix):
    """Pure-JAX reference matching the PyTorch forward."""
    emb = jnp.take(reduced_matrix, input_ids, axis=0)          # (B, S, L)
    B, S, L = emb.shape
    D = second_matrix.shape[1]
    return (emb.reshape(-1, L) @ second_matrix).reshape(B, S, D)


if __name__ == "__main__":
    key = jax.random.PRNGKey(0)

    # --- Test 1: small shapes consistent with the module -------------------
    #   vocab V=32, latent L=16, hidden D=32, batch B=2, seq S=8.
    k_emb, k_w, k_ids, key = jax.random.split(key, 4)
    B, S = 2, 8
    V, L, D = 32, 16, 32
    pad_token_id = 0  # stored by the module; forward is still a plain gather

    reduced_matrix = jax.random.normal(k_emb, (V, L), dtype=jnp.float32)
    second_matrix = jax.random.normal(k_w, (L, D), dtype=jnp.float32)
    input_ids = jax.random.randint(k_ids, (B, S), 0, V, dtype=jnp.int32)

    out = jax.block_until_ready(
        mf_word_embedding(input_ids, reduced_matrix, second_matrix))
    ref = mf_word_embedding_ref(input_ids, reduced_matrix, second_matrix)
    assert out.shape == (B, S, D), out.shape
    assert jnp.allclose(out, ref, atol=1e-4, rtol=1e-5), "mismatch vs reference (test 1)"

    # --- Test 2: exercises multi-block grid (2 token blocks x 3 D tiles),
    #             the gather-once-per-token-block path and td=128 tiling. ----
    k_emb2, k_w2, k_ids2, key = jax.random.split(key, 4)
    B2, S2 = 4, 128
    V2, L2_, D2 = 512, 64, 384
    reduced2 = jax.random.normal(k_emb2, (V2, L2_), dtype=jnp.float32)
    second2 = jax.random.normal(k_w2, (L2_, D2), dtype=jnp.float32)
    ids2 = jax.random.randint(k_ids2, (B2, S2), 0, V2, dtype=jnp.int32)

    out2 = jax.block_until_ready(mf_word_embedding(ids2, reduced2, second2))
    ref2 = mf_word_embedding_ref(ids2, reduced2, second2)
    assert out2.shape == (B2, S2, D2), out2.shape
    assert jnp.allclose(out2, ref2, atol=1e-3, rtol=1e-5), "mismatch vs reference (test 2)"

    print("KERNEL_OK")
</pallas_src>

<mosaic_0001>
module attributes {stable_mosaic.version = 11 : i64} {
  func.func @_mf_word_embedding_kernel(%arg0: i32, %arg1: i32, %arg2: memref<16xi32, #tpu.memory_space<smem>>, %arg3: memref<32x16xf32, #tpu.memory_space<any>>, %arg4: memref<16x32xf32, #tpu.memory_space<vmem>>, %arg5: memref<16x32xf32, #tpu.memory_space<vmem>>, %arg6: memref<16x16xf32, #tpu.memory_space<vmem>>, %arg7: memref<8x!tpu.dma_semaphore, #tpu.memory_space<semaphore_mem>>) attributes {dimension_semantics = [#tpu.dimension_semantics<parallel>, #tpu.dimension_semantics<arbitrary>], iteration_bounds = array<i64: 1, 1>, scalar_prefetch = 1 : i64, scratch_operands = 2 : i64, tpu.core_type = #tpu.core_type<tc>, window_params = [{}, {transform_indices = @transform_1, window_bounds = array<i64: 16, 32>}, {transform_indices = @transform_2, window_bounds = array<i64: 16, 32>}]} {
    %c16_i32 = arith.constant 16 : i32
    %0 = arith.muli %arg0, %c16_i32 : i32
    %c0_i32 = arith.constant 0 : i32
    %1 = arith.cmpi eq, %arg1, %c0_i32 : i32
    %2 = arith.extui %1 : i1 to i32
    %c0_i32_0 = arith.constant 0 : i32
    %3 = arith.cmpi ne, %2, %c0_i32_0 : i32
    scf.if %3 {
      %c0_i32_6 = arith.constant 0 : i32
      %8 = arith.addi %0, %c0_i32_6 : i32
      %9 = arith.index_cast %8 : i32 to index
      %10 = memref.load %arg2[%9] : memref<16xi32, #tpu.memory_space<smem>>
      %c0_i32_7 = arith.constant 0 : i32
      %c0_i32_8 = arith.constant 0 : i32
      %11 = tpu.memref_slice %arg3[%10, %c0_i32_8] : memref<32x16xf32, #tpu.memory_space<any>> -> memref<1x16xf32, #tpu.memory_space<any>>
      %c0_i32_9 = arith.constant 0 : i32
      %c0_i32_10 = arith.constant 0 : i32
      %12 = tpu.memref_slice %arg6[%c0_i32_9, %c0_i32_10] : memref<16x16xf32, #tpu.memory_space<vmem>> -> memref<1x16xf32, #tpu.memory_space<vmem>>
      %13 = tpu.memref_slice %arg7[%c0_i32_7] : memref<8x!tpu.dma_semaphore, #tpu.memory_space<semaphore_mem>> -> memref<1x!tpu.dma_semaphore, #tpu.memory_space<semaphore_mem>>
      %14 = tpu.memref_squeeze %13 : memref<1x!tpu.dma_semaphore, #tpu.memory_space<semaphore_mem>> -> memref<!tpu.dma_semaphore, #tpu.memory_space<semaphore_mem>>
      tpu.enqueue_dma source(%11 : memref<1x16xf32, #tpu.memory_space<any>>) target(%12 : memref<1x16xf32, #tpu.memory_space<vmem>>) target_semaphore(%14 : memref<!tpu.dma_semaphore, #tpu.memory_space<semaphore_mem>>)
      %c1_i32 = arith.constant 1 : i32
      %15 = arith.addi %0, %c1_i32 : i32
      %16 = arith.index_cast %15 : i32 to index
      %17 = memref.load %arg2[%16] : memref<16xi32, #tpu.memory_space<smem>>
      %c1_i32_11 = arith.constant 1 : i32
      %c0_i32_12 = arith.constant 0 : i32
      %18 = tpu.memref_slice %arg3[%17, %c0_i32_12] : memref<32x16xf32, #tpu.memory_space<any>> -> memref<1x16xf32, #tpu.memory_space<any>>
      %c1_i32_13 = arith.constant 1 : i32
      %c0_i32_14 = arith.constant 0 : i32
      %19 = tpu.memref_slice %arg6[%c1_i32_13, %c0_i32_14] : memref<16x16xf32, #tpu.memory_space<vmem>> -> memref<1x16xf32, #tpu.memory_space<vmem>>
      %20 = tpu.memref_slice %arg7[%c1_i32_11] : memref<8x!tpu.dma_semaphore, #tpu.memory_space<semaphore_mem>> -> memref<1x!tpu.dma_semaphore, #tpu.memory_space<semaphore_mem>>
      %21 = tpu.memref_squeeze %20 : memref<1x!tpu.dma_semaphore, #tpu.memory_space<semaphore_mem>> -> memref<!tpu.dma_semaphore, #tpu.memory_space<semaphore_mem>>
      tpu.enqueue_dma source(%18 : memref<1x16xf32, #tpu.memory_space<any>>) target(%19 : memref<1x16xf32, #tpu.memory_space<vmem>>) target_semaphore(%21 : memref<!tpu.dma_semaphore, #tpu.memory_space<semaphore_mem>>)
      %c2_i32 = arith.constant 2 : i32
      %22 = arith.addi %0, %c2_i32 : i32
      %23 = arith.index_cast %22 : i32 to index
      %24 = memref.load %arg2[%23] : memref<16xi32, #tpu.memory_space<smem>>
      %c2_i32_15 = arith.constant 2 : i32
      %c0_i32_16 = arith.constant 0 : i32
      %25 = tpu.memref_slice %arg3[%24, %c0_i32_16] : memref<32x16xf32, #tpu.memory_space<any>> -> memref<1x16xf32, #tpu.memory_space<any>>
      %c2_i32_17 = arith.constant 2 : i32
      %c0_i32_18 = arith.constant 0 : i32
      %26 = tpu.memref_slice %arg6[%c2_i32_17, %c0_i32_18] : memref<16x16xf32, #tpu.memory_space<vmem>> -> memref<1x16xf32, #tpu.memory_space<vmem>>
      %27 = tpu.memref_slice %arg7[%c2_i32_15] : memref<8x!tpu.dma_semaphore, #tpu.memory_space<semaphore_mem>> -> memref<1x!tpu.dma_semaphore, #tpu.memory_space<semaphore_mem>>
      %28 = tpu.memref_squeeze %27 : memref<1x!tpu.dma_semaphore, #tpu.memory_space<semaphore_mem>> -> memref<!tpu.dma_semaphore, #tpu.memory_space<semaphore_mem>>
      tpu.enqueue_dma source(%25 : memref<1x16xf32, #tpu.memory_space<any>>) target(%26 : memref<1x16xf32, #tpu.memory_space<vmem>>) target_semaphore(%28 : memref<!tpu.dma_semaphore, #tpu.memory_space<semaphore_mem>>)
      %c3_i32 = arith.constant 3 : i32
      %29 = arith.addi %0, %c3_i32 : i32
      %30 = arith.index_cast %29 : i32 to index
      %31 = memref.load %arg2[%30] : memref<16xi32, #tpu.memory_space<smem>>
      %c3_i32_19 = arith.constant 3 : i32
      %c0_i32_20 = arith.constant 0 : i32
      %32 = tpu.memref_slice %arg3[%31, %c0_i32_20] : memref<32x16xf32, #tpu.memory_space<any>> -> memref<1x16xf32, #tpu.memory_space<any>>
      %c3_i32_21 = arith.constant 3 : i32
      %c0_i32_22 = arith.constant 0 : i32
      %33 = tpu.memref_slice %arg6[%c3_i32_21, %c0_i32_22] : memref<16x16xf32, #tpu.memory_space<vmem>> -> memref<1x16xf32, #tpu.memory_space<vmem>>
      %34 = tpu.memref_slice %arg7[%c3_i32_19] : memref<8x!tpu.dma_semaphore, #tpu.memory_space<semaphore_mem>> -> memref<1x!tpu.dma_semaphore, #tpu.memory_space<semaphore_mem>>
      %35 = tpu.memref_squeeze %34 : memref<1x!tpu.dma_semaphore, #tpu.memory_space<semaphore_mem>> -> memref<!tpu.dma_semaphore, #tpu.memory_space<semaphore_mem>>
      tpu.enqueue_dma source(%32 : memref<1x16xf32, #tpu.memory_space<any>>) target(%33 : memref<1x16xf32, #tpu.memory_space<vmem>>) target_semaphore(%35 : memref<!tpu.dma_semaphore, #tpu.memory_space<semaphore_mem>>)
      %c4_i32 = arith.constant 4 : i32
      %36 = arith.addi %0, %c4_i32 : i32
      %37 = arith.index_cast %36 : i32 to index
      %38 = memref.load %arg2[%37] : memref<16xi32, #tpu.memory_space<smem>>
      %c4_i32_23 = arith.constant 4 : i32
      %c0_i32_24 = arith.constant 0 : i32
      %39 = tpu.memref_slice %arg3[%38, %c0_i32_24] : memref<32x16xf32, #tpu.memory_space<any>> -> memref<1x16xf32, #tpu.memory_space<any>>
      %c4_i32_25 = arith.constant 4 : i32
      %c0_i32_26 = arith.constant 0 : i32
      %40 = tpu.memref_slice %arg6[%c4_i32_25, %c0_i32_26] : memref<16x16xf32, #tpu.memory_space<vmem>> -> memref<1x16xf32, #tpu.memory_space<vmem>>
      %41 = tpu.memref_slice %arg7[%c4_i32_23] : memref<8x!tpu.dma_semaphore, #tpu.memory_space<semaphore_mem>> -> memref<1x!tpu.dma_semaphore, #tpu.memory_space<semaphore_mem>>
      %42 = tpu.memref_squeeze %41 : memref<1x!tpu.dma_semaphore, #tpu.memory_space<semaphore_mem>> -> memref<!tpu.dma_semaphore, #tpu.memory_space<semaphore_mem>>
      tpu.enqueue_dma source(%39 : memref<1x16xf32, #tpu.memory_space<any>>) target(%40 : memref<1x16xf32, #tpu.memory_space<vmem>>) target_semaphore(%42 : memref<!tpu.dma_semaphore, #tpu.memory_space<semaphore_mem>>)
      %c5_i32 = arith.constant 5 : i32
      %43 = arith.addi %0, %c5_i32 : i32
      %44 = arith.index_cast %43 : i32 to index
      %45 = memref.load %arg2[%44] : memref<16xi32, #tpu.memory_space<smem>>
      %c5_i32_27 = arith.constant 5 : i32
      %c0_i32_28 = arith.constant 0 : i32
      %46 = tpu.memref_slice %arg3[%45, %c0_i32_28] : memref<32x16xf32, #tpu.memory_space<any>> -> memref<1x16xf32, #tpu.memory_space<any>>
      %c5_i32_29 = arith.constant 5 : i32
      %c0_i32_30 = arith.constant 0 : i32
      %47 = tpu.memref_slice %arg6[%c5_i32_29, %c0_i32_30] : memref<16x16xf32, #tpu.memory_space<vmem>> -> memref<1x16xf32, #tpu.memory_space<vmem>>
      %48 = tpu.memref_slice %arg7[%c5_i32_27] : memref<8x!tpu.dma_semaphore, #tpu.memory_space<semaphore_mem>> -> memref<1x!tpu.dma_semaphore, #tpu.memory_space<semaphore_mem>>
      %49 = tpu.memref_squeeze %48 : memref<1x!tpu.dma_semaphore, #tpu.memory_space<semaphore_mem>> -> memref<!tpu.dma_semaphore, #tpu.memory_space<semaphore_mem>>
      tpu.enqueue_dma source(%46 : memref<1x16xf32, #tpu.memory_space<any>>) target(%47 : memref<1x16xf32, #tpu.memory_space<vmem>>) target_semaphore(%49 : memref<!tpu.dma_semaphore, #tpu.memory_space<semaphore_mem>>)
      %c6_i32 = arith.constant 6 : i32
      %50 = arith.addi %0, %c6_i32 : i32
      %51 = arith.index_cast %50 : i32 to index
      %52 = memref.load %arg2[%51] : memref<16xi32, #tpu.memory_space<smem>>
      %c6_i32_31 = arith.constant 6 : i32
      %c0_i32_32 = arith.constant 0 : i32
      %53 = tpu.memref_slice %arg3[%52, %c0_i32_32] : memref<32x16xf32, #tpu.memory_space<any>> -> memref<1x16xf32, #tpu.memory_space<any>>
      %c6_i32_33 = arith.constant 6 : i32
      %c0_i32_34 = arith.constant 0 : i32
      %54 = tpu.memref_slice %arg6[%c6_i32_33, %c0_i32_34] : memref<16x16xf32, #tpu.memory_space<vmem>> -> memref<1x16xf32, #tpu.memory_space<vmem>>
      %55 = tpu.memref_slice %arg7[%c6_i32_31] : memref<8x!tpu.dma_semaphore, #tpu.memory_space<semaphore_mem>> -> memref<1x!tpu.dma_semaphore, #tpu.memory_space<semaphore_mem>>
      %56 = tpu.memref_squeeze %55 : memref<1x!tpu.dma_semaphore, #tpu.memory_space<semaphore_mem>> -> memref<!tpu.dma_semaphore, #tpu.memory_space<semaphore_mem>>
      tpu.enqueue_dma source(%53 : memref<1x16xf32, #tpu.memory_space<any>>) target(%54 : memref<1x16xf32, #tpu.memory_space<vmem>>) target_semaphore(%56 : memref<!tpu.dma_semaphore, #tpu.memory_space<semaphore_mem>>)
      %c7_i32 = arith.constant 7 : i32
      %57 = arith.addi %0, %c7_i32 : i32
      %58 = arith.index_cast %57 : i32 to index
      %59 = memref.load %arg2[%58] : memref<16xi32, #tpu.memory_space<smem>>
      %c7_i32_35 = arith.constant 7 : i32
      %c0_i32_36 = arith.constant 0 : i32
      %60 = tpu.memref_slice %arg3[%59, %c0_i32_36] : memref<32x16xf32, #tpu.memory_space<any>> -> memref<1x16xf32, #tpu.memory_space<any>>
      %c7_i32_37 = arith.constant 7 : i32
      %c0_i32_38 = arith.constant 0 : i32
      %61 = tpu.memref_slice %arg6[%c7_i32_37, %c0_i32_38] : memref<16x16xf32, #tpu.memory_space<vmem>> -> memref<1x16xf32, #tpu.memory_space<vmem>>
      %62 = tpu.memref_slice %arg7[%c7_i32_35] : memref<8x!tpu.dma_semaphore, #tpu.memory_space<semaphore_mem>> -> memref<1x!tpu.dma_semaphore, #tpu.memory_space<semaphore_mem>>
      %63 = tpu.memref_squeeze %62 : memref<1x!tpu.dma_semaphore, #tpu.memory_space<semaphore_mem>> -> memref<!tpu.dma_semaphore, #tpu.memory_space<semaphore_mem>>
      tpu.enqueue_dma source(%60 : memref<1x16xf32, #tpu.memory_space<any>>) target(%61 : memref<1x16xf32, #tpu.memory_space<vmem>>) target_semaphore(%63 : memref<!tpu.dma_semaphore, #tpu.memory_space<semaphore_mem>>)
      %c0_i32_39 = arith.constant 0 : i32
      %c16_i32_40 = arith.constant 16 : i32
      %64 = arith.addi %c0_i32_39, %c16_i32_40 : i32
      %c1_i32_41 = arith.constant 1 : i32
      scf.for %arg8 = %c0_i32_39 to %64 step %c1_i32_41  : i32 {
        %c8_i32 = arith.constant 8 : i32
        %c0_i32_43 = arith.constant 0 : i32
        %65 = arith.cmpi eq, %c8_i32, %c0_i32_43 : i32
        %c1_i32_44 = arith.constant 1 : i32
        %66 = arith.select %65, %c1_i32_44, %c8_i32 : i32
        %67 = arith.remsi %arg8, %66 : i32
        %c0_i32_45 = arith.constant 0 : i32
        %68 = arith.cmpi ne, %67, %c0_i32_45 : i32
        %c0_i32_46 = arith.constant 0 : i32
        %69 = arith.cmpi slt, %67, %c0_i32_46 : i32
        %c0_i32_47 = arith.constant 0 : i32
        %70 = arith.cmpi slt, %66, %c0_i32_47 : i32
        %71 = arith.xori %69, %70 : i1
        %72 = arith.andi %71, %68 : i1
        %73 = arith.addi %67, %66 : i32
        %74 = arith.select %72, %73, %67 : i32
        %75 = arith.addi %0, %arg8 : i32
        %76 = arith.index_cast %75 : i32 to index
        %77 = memref.load %arg2[%76] : memref<16xi32, #tpu.memory_space<smem>>
        %c0_i32_48 = arith.constant 0 : i32
        %78 = tpu.memref_slice %arg3[%77, %c0_i32_48] : memref<32x16xf32, #tpu.memory_space<any>> -> memref<1x16xf32, #tpu.memory_space<any>>
        %c0_i32_49 = arith.constant 0 : i32
        %79 = tpu.memref_slice %arg6[%arg8, %c0_i32_49] : memref<16x16xf32, #tpu.memory_space<vmem>> -> memref<1x16xf32, #tpu.memory_space<vmem>>
        %80 = tpu.memref_slice %arg7[%74] : memref<8x!tpu.dma_semaphore, #tpu.memory_space<semaphore_mem>> -> memref<1x!tpu.dma_semaphore, #tpu.memory_space<semaphore_mem>>
        %81 = tpu.memref_squeeze %80 : memref<1x!tpu.dma_semaphore, #tpu.memory_space<semaphore_mem>> -> memref<!tpu.dma_semaphore, #tpu.memory_space<semaphore_mem>>
        tpu.wait_dma2 semaphore(%81 : memref<!tpu.dma_semaphore, #tpu.memory_space<semaphore_mem>>) src(%78 : memref<1x16xf32, #tpu.memory_space<any>>) dst(%79 : memref<1x16xf32, #tpu.memory_space<vmem>>)
        %c8_i32_50 = arith.constant 8 : i32
        %82 = arith.addi %arg8, %c8_i32_50 : i32
        %c16_i32_51 = arith.constant 16 : i32
        %83 = arith.cmpi slt, %82, %c16_i32_51 : i32
        %84 = arith.extui %83 : i1 to i32
        %c0_i32_52 = arith.constant 0 : i32
        %85 = arith.cmpi ne, %84, %c0_i32_52 : i32
        scf.if %85 {
          %c8_i32_53 = arith.constant 8 : i32
          %86 = arith.addi %arg8, %c8_i32_53 : i32
          %87 = arith.addi %0, %86 : i32
          %88 = arith.index_cast %87 : i32 to index
          %89 = memref.load %arg2[%88] : memref<16xi32, #tpu.memory_space<smem>>
          %c0_i32_54 = arith.constant 0 : i32
          %90 = tpu.memref_slice %arg3[%89, %c0_i32_54] : memref<32x16xf32, #tpu.memory_space<any>> -> memref<1x16xf32, #tpu.memory_space<any>>
          %c0_i32_55 = arith.constant 0 : i32
          %91 = tpu.memref_slice %arg6[%86, %c0_i32_55] : memref<16x16xf32, #tpu.memory_space<vmem>> -> memref<1x16xf32, #tpu.memory_space<vmem>>
          %92 = tpu.memref_slice %arg7[%74] : memref<8x!tpu.dma_semaphore, #tpu.memory_space<semaphore_mem>> -> memref<1x!tpu.dma_semaphore, #tpu.memory_space<semaphore_mem>>
          %93 = tpu.memref_squeeze %92 : memref<1x!tpu.dma_semaphore, #tpu.memory_space<semaphore_mem>> -> memref<!tpu.dma_semaphore, #tpu.memory_space<semaphore_mem>>
          tpu.enqueue_dma source(%90 : memref<1x16xf32, #tpu.memory_space<any>>) target(%91 : memref<1x16xf32, #tpu.memory_space<vmem>>) target_semaphore(%93 : memref<!tpu.dma_semaphore, #tpu.memory_space<semaphore_mem>>)
        } else {
        }
      }
      %c16_i32_42 = arith.constant 16 : i32
    } else {
    }
    %c0 = arith.constant 0 : index
    %c0_1 = arith.constant 0 : index
    %4 = vector.load %arg6[%c0, %c0_1] : memref<16x16xf32, #tpu.memory_space<vmem>>, vector<16x16xf32>
    %c0_2 = arith.constant 0 : index
    %c0_3 = arith.constant 0 : index
    %5 = vector.load %arg4[%c0_2, %c0_3] : memref<16x32xf32, #tpu.memory_space<vmem>>, vector<16x32xf32>
    %cst = arith.constant dense<0.000000e+00> : vector<16x32xf32>
    %6 = tpu.matmul %4, %5, %cst {dimension_numbers = #tpu.dot_dimension_numbers<[1], [0], [0], [1], [0, 0, 1, 1], [], []>} : vector<16x16xf32>, vector<16x32xf32>, vector<16x32xf32> -> vector<16x32xf32>
    %c0_4 = arith.constant 0 : index
    %c0_5 = arith.constant 0 : index
    %7 = vector.load %arg5[%c0_4, %c0_5] : memref<16x32xf32, #tpu.memory_space<vmem>>, vector<16x32xf32>
    tpu.vector_store %arg5[%c0_4, %c0_5], %6 {strides = array<i32>} : memref<16x32xf32, #tpu.memory_space<vmem>>, vector<16x32xf32>,
    return
  }
  func.func @transform_1(%arg0: i32, %arg1: i32, %arg2: memref<16xi32, #tpu.memory_space<smem>>) -> (i32, i32) {
    %c0_i32 = arith.constant 0 : i32
    %c0_i32_0 = arith.constant 0 : i32
    return %c0_i32, %arg1 : i32, i32
  }
  func.func @transform_2(%arg0: i32, %arg1: i32, %arg2: memref<16xi32, #tpu.memory_space<smem>>) -> (i32, i32) {
    %c0_i32 = arith.constant 0 : i32
    return %arg0, %arg1 : i32, i32
  }
}

</mosaic_0001>

<llo_original>
// kernel: tpu_custom_call.1
$region0: #{tpu_custom_call.1}
  #allocation0 [shape = 'u32[]', space=smem, size = 0x4, offset = 0x4, fixed_abs, tag = 'smem constant byte address 0x4 - core index']
  #allocation1 [shape = 'u32[72,128]{1,0:T(1,128)}', space=vmem, size = 0x9000, scoped, tag = 'internal scratch']
  #allocation2 [shape = 'f32[16,16]{1,0:T(8,128)}', space=vmem, size = 0x2000, scoped, tag = 'scratch operand']
  #allocation3 [shape = 's32[8]{0}', space=sflag, size = 0x20, scoped, tag = 'scratch operand']
  #allocation4 [shape = 's32[1]{0}', space=sflag, size = 0x4, scoped, tag = 'scoped memory for tpu_custom_call.1']
  #allocation5 [shape = 'u8[512]{0}', space=smem, size = 0x200, scoped, tag = 'prefetched SMEM operand 0']
  #allocation8 [shape = 's32[]', space=sflag, size = 0x4, offset = 0, fixed_abs, tag = 'sflag constant byte address 0x0 - dummy sync flag']
  #allocation9 [shape = 's32[]', space=sflag, size = 0x4, offset = 0, fixed_abs, tag = 'sflag constant byte address 0x0 - dummy sync flag']
  #allocation10 [shape = 's32[]', space=sflag, size = 0x4, offset = 0, fixed_abs, tag = 'sflag constant byte address 0x0 - dummy sync flag']
  #allocation11 [shape = 's32[]', space=sflag, size = 0x4, offset = 0, fixed_abs, tag = 'sflag constant byte address 0x0 - dummy sync flag']
  #allocation12 [shape = 's32[]', space=sflag, size = 0x4, offset = 0, fixed_abs, tag = 'sflag constant byte address 0x0 - dummy sync flag']
  #allocation13 [shape = 's32[]', space=sflag, size = 0x4, offset = 0, fixed_abs, tag = 'sflag constant byte address 0x0 - dummy sync flag']
  #allocation14 [shape = 's32[]', space=sflag, size = 0x4, offset = 0, fixed_abs, tag = 'sflag constant byte address 0x0 - dummy sync flag']
  #allocation15 [shape = 's32[]', space=sflag, size = 0x4, offset = 0, fixed_abs, tag = 'sflag constant byte address 0x0 - dummy sync flag']
  #allocation16 [shape = 's32[]', space=sflag, size = 0x4, offset = 0, fixed_abs, tag = 'sflag constant byte address 0x0 - dummy sync flag']
  %s0 = inlined_call_operand.vmem [shape: s32[16], index: 0, kind: input, shape index: {}]
  %s1 = inlined_call_operand.vmem [shape: f32[32,16], index: 1, kind: input, shape index: {}]
  %s2 = inlined_call_operand.vmem [shape: f32[16,32], index: 2, kind: input, shape index: {}]
  %s3 = inlined_call_operand.hbm [shape: f32[16,32], index: 3, kind: output, shape index: {}]
  %s4 = sld [smem:[#allocation0]]
  $region299: #{tpu_custom_call.1} parent=0
    _
  %s6 = ssub.s32 1, %s4
  %s7 = scalar_select 0, %s6, %s4
  %s9 = sshll.u32 %s0, 4
  %s10 = int_to_ptr.vmem [resolvable:$true] %s9
  %12 = dma.vmem_to_smem %s10, 16, [#allocation5], [#allocation4]
  %14 = dma.done [#allocation4], 16
  %15 = sfence
  $region1: #{tpu_custom_call.1} parent=0
    #allocation6 [shape = 'u8[8192]{0}', space=vmem, size = 0x2000, scoped, tag = 'output window, operand 0, single buffered']
    #allocation7 [shape = 's32[1]{0}', space=sflag, size = 0x4, scoped, tag = 'scoped memory for tpu_custom_call.1']
    %16 = vsyncpa [#allocation7], 0
    // Predicated region
    $region2: #{tpu_custom_call.1} parent=1 // pred_check
      _
    $region3: #{tpu_custom_call.1} parent=1 // pred_check_branch
      %18 = sbr.rel (0) target = $region5
    $region4: #{tpu_custom_call.1} parent=1 // pred_region
      _
    $region5: #{tpu_custom_call.1} parent=1 // pred_fallthru
      _
    %s19 = smul.u32 0, 16
    %p20 = scmp.eq.s32.totalorder 0, 0
    // Predicated region
    $region6: #{tpu_custom_call.1} parent=1 // pred_check
      %p21 = pneg %p20
    $region7: #{tpu_custom_call.1} parent=1 // pred_check_branch
      %23 = sbr.rel (%p21) target = $region9
    $region8: #{tpu_custom_call.1} parent=1 // pred_region
      %s24 = sld [smem:[#allocation5 + %s19]]
      %s25 = scalar_lea.vmem %s1, %s24
      // Predicated region
      $region10: #{tpu_custom_call.1} parent=8 // pred_check
        _
      $region11: #{tpu_custom_call.1} parent=8 // pred_check_branch
        %27 = sbr.rel target = $region13
      $region12: #{tpu_custom_call.1} parent=8 // pred_region
        // Predicated region
        $region25: #{tpu_custom_call.1} parent=12 // pred_check
          _
        $region26: #{tpu_custom_call.1} parent=12 // pred_check_branch
          %43 = sbr.rel (0) target = $region28
        $region27: #{tpu_custom_call.1} parent=12 // pred_region
          %s45 = ssub.s32 2, 1
          loop: start=0, step=1, limit=1
          $region29: #{tpu_custom_call.1} parent=27 // loop_pre_header
            _
          $region30: #{tpu_custom_call.1} parent=27 // loop_header
            %s47 = sphi 0, %s51
            %p48 = scmp.ge.s32.totalorder %s47, 1
            %s52 = sphi %s25, %s25
            %s53 = sphi [#allocation2], [#allocation2]
          $region31: #{tpu_custom_call.1} parent=27 // loop_header_branch
            %50 = sbr.rel (%p48) target = $region35
          $region32: #{tpu_custom_call.1} parent=27 // loop_body
            %v54 = vld [vmem:[%s52] sm:%s45]
            %55 = vst [vmem:[%s53] sm:%s45] %v54
          $region33: #{tpu_custom_call.1} parent=27 // loop_footer
            %s51 = sadd.s32 1, %s47
          $region34: #{tpu_custom_call.1} parent=27 // loop_footer_branch
            %46 = sbr.rel target = $region30
          $region35: #{tpu_custom_call.1} parent=27 // loop_exit
            _
        $region28: #{tpu_custom_call.1} parent=12 // pred_fallthru
          _
      $region13: #{tpu_custom_call.1} parent=8 // pred_fallthru
        _
      // Predicated region
      $region14: #{tpu_custom_call.1} parent=8 // pred_check
        _
      $region15: #{tpu_custom_call.1} parent=8 // pred_check_branch
        %29 = sbr.rel (0) target = $region17
      $region16: #{tpu_custom_call.1} parent=8 // pred_region
        %s31 = ssub.s32 2, 1
        loop: start=0, step=1, limit=1
        $region18: #{tpu_custom_call.1} parent=16 // loop_pre_header
          _
        $region19: #{tpu_custom_call.1} parent=16 // loop_header
          %s33 = sphi 0, %s37
          %p34 = scmp.ge.s32.totalorder %s33, 1
          %s38 = sphi %s25, %s25
          %s39 = sphi [#allocation2], [#allocation2]
        $region20: #{tpu_custom_call.1} parent=16 // loop_header_branch
          %36 = sbr.rel (%p34) target = $region24
        $region21: #{tpu_custom_call.1} parent=16 // loop_body
          %v40 = vld [vmem:[%s38] sm:%s31]
          %41 = vst [vmem:[%s39] sm:%s31] %v40
        $region22: #{tpu_custom_call.1} parent=16 // loop_footer
          %s37 = sadd.s32 1, %s33
        $region23: #{tpu_custom_call.1} parent=16 // loop_footer_branch
          %32 = sbr.rel target = $region19
        $region24: #{tpu_custom_call.1} parent=16 // loop_exit
          _
      $region17: #{tpu_custom_call.1} parent=8 // pred_fallthru
        _
      // Predicated region
      $region36: #{tpu_custom_call.1} parent=8 // pred_check
        _
      $region37: #{tpu_custom_call.1} parent=8 // pred_check_branch
        %58 = sbr.rel (0) target = $region39
      $region38: #{tpu_custom_call.1} parent=8 // pred_region
        %59 = vsyncadd [#allocation3], 16
      $region39: #{tpu_custom_call.1} parent=8 // pred_fallthru
        _
      %s60 = sadd.s32 %s19, 1
      %s61 = sld [smem:[#allocation5 + %s60]]
      %s62 = scalar_lea.vmem %s1, %s61
      %s63 = scalar_lea.vmem [#allocation2], 1
      %s64 = scalar_lea.sflag [#allocation3], 1
      // Predicated region
      $region40: #{tpu_custom_call.1} parent=8 // pred_check
        _
      $region41: #{tpu_custom_call.1} parent=8 // pred_check_branch
        %66 = sbr.rel target = $region43
      $region42: #{tpu_custom_call.1} parent=8 // pred_region
        // Predicated region
        $region55: #{tpu_custom_call.1} parent=42 // pred_check
          _
        $region56: #{tpu_custom_call.1} parent=42 // pred_check_branch
          %82 = sbr.rel (0) target = $region58
        $region57: #{tpu_custom_call.1} parent=42 // pred_region
          %s84 = ssub.s32 2, 1
          loop: start=0, step=1, limit=1
          $region59: #{tpu_custom_call.1} parent=57 // loop_pre_header
            _
          $region60: #{tpu_custom_call.1} parent=57 // loop_header
            %s86 = sphi 0, %s90
            %p87 = scmp.ge.s32.totalorder %s86, 1
            %s91 = sphi %s62, %s62
            %s92 = sphi %s63, %s63
          $region61: #{tpu_custom_call.1} parent=57 // loop_header_branch
            %89 = sbr.rel (%p87) target = $region65
          $region62: #{tpu_custom_call.1} parent=57 // loop_body
            %v93 = vld [vmem:[%s91] sm:%s84]
            %94 = vst [vmem:[%s92] sm:%s84] %v93
          $region63: #{tpu_custom_call.1} parent=57 // loop_footer
            %s90 = sadd.s32 1, %s86
          $region64: #{tpu_custom_call.1} parent=57 // loop_footer_branch
            %85 = sbr.rel target = $region60
          $region65: #{tpu_custom_call.1} parent=57 // loop_exit
            _
        $region58: #{tpu_custom_call.1} parent=42 // pred_fallthru
          _
      $region43: #{tpu_custom_call.1} parent=8 // pred_fallthru
        _
      // Predicated region
      $region44: #{tpu_custom_call.1} parent=8 // pred_check
        _
      $region45: #{tpu_custom_call.1} parent=8 // pred_check_branch
        %68 = sbr.rel (0) target = $region47
      $region46: #{tpu_custom_call.1} parent=8 // pred_region
        %s70 = ssub.s32 2, 1
        loop: start=0, step=1, limit=1
        $region48: #{tpu_custom_call.1} parent=46 // loop_pre_header
          _
        $region49: #{tpu_custom_call.1} parent=46 // loop_header
          %s72 = sphi 0, %s76
          %p73 = scmp.ge.s32.totalorder %s72, 1
          %s77 = sphi %s62, %s62
          %s78 = sphi %s63, %s63
        $region50: #{tpu_custom_call.1} parent=46 // loop_header_branch
          %75 = sbr.rel (%p73) target = $region54
        $region51: #{tpu_custom_call.1} parent=46 // loop_body
          %v79 = vld [vmem:[%s77] sm:%s70]
          %80 = vst [vmem:[%s78] sm:%s70] %v79
        $region52: #{tpu_custom_call.1} parent=46 // loop_footer
          %s76 = sadd.s32 1, %s72
        $region53: #{tpu_custom_call.1} parent=46 // loop_footer_branch
          %71 = sbr.rel target = $region49
        $region54: #{tpu_custom_call.1} parent=46 // loop_exit
          _
      $region47: #{tpu_custom_call.1} parent=8 // pred_fallthru
        _
      // Predicated region
      $region66: #{tpu_custom_call.1} parent=8 // pred_check
        _
      $region67: #{tpu_custom_call.1} parent=8 // pred_check_branch
        %97 = sbr.rel (0) target = $region69
      $region68: #{tpu_custom_call.1} parent=8 // pred_region
        %98 = vsyncadd %s64, 16
      $region69: #{tpu_custom_call.1} parent=8 // pred_fallthru
        _
      %s99 = sadd.s32 %s19, 2
      %s100 = sld [smem:[#allocation5 + %s99]]
      %s101 = scalar_lea.vmem %s1, %s100
      %s102 = scalar_lea.vmem [#allocation2], 2
      %s103 = scalar_lea.sflag [#allocation3], 2
      // Predicated region
      $region70: #{tpu_custom_call.1} parent=8 // pred_check
        _
      $region71: #{tpu_custom_call.1} parent=8 // pred_check_branch
        %105 = sbr.rel target = $region73
      $region72: #{tpu_custom_call.1} parent=8 // pred_region
        // Predicated region
        $region85: #{tpu_custom_call.1} parent=72 // pred_check
          _
        $region86: #{tpu_custom_call.1} parent=72 // pred_check_branch
          %121 = sbr.rel (0) target = $region88
        $region87: #{tpu_custom_call.1} parent=72 // pred_region
          %s123 = ssub.s32 2, 1
          loop: start=0, step=1, limit=1
          $region89: #{tpu_custom_call.1} parent=87 // loop_pre_header
            _
          $region90: #{tpu_custom_call.1} parent=87 // loop_header
            %s125 = sphi 0, %s129
            %p126 = scmp.ge.s32.totalorder %s125, 1
            %s130 = sphi %s101, %s101
            %s131 = sphi %s102, %s102
          $region91: #{tpu_custom_call.1} parent=87 // loop_header_branch
            %128 = sbr.rel (%p126) target = $region95
          $region92: #{tpu_custom_call.1} parent=87 // loop_body
            %v132 = vld [vmem:[%s130] sm:%s123]
            %133 = vst [vmem:[%s131] sm:%s123] %v132
          $region93: #{tpu_custom_call.1} parent=87 // loop_footer
            %s129 = sadd.s32 1, %s125
          $region94: #{tpu_custom_call.1} parent=87 // loop_footer_branch
            %124 = sbr.rel target = $region90
          $region95: #{tpu_custom_call.1} parent=87 // loop_exit
            _
        $region88: #{tpu_custom_call.1} parent=72 // pred_fallthru
          _
      $region73: #{tpu_custom_call.1} parent=8 // pred_fallthru
        _
      // Predicated region
      $region74: #{tpu_custom_call.1} parent=8 // pred_check
        _
      $region75: #{tpu_custom_call.1} parent=8 // pred_check_branch
        %107 = sbr.rel (0) target = $region77
      $region76: #{tpu_custom_call.1} parent=8 // pred_region
        %s109 = ssub.s32 2, 1
        loop: start=0, step=1, limit=1
        $region78: #{tpu_custom_call.1} parent=76 // loop_pre_header
          _
        $region79: #{tpu_custom_call.1} parent=76 // loop_header
          %s111 = sphi 0, %s115
          %p112 = scmp.ge.s32.totalorder %s111, 1
          %s116 = sphi %s101, %s101
          %s117 = sphi %s102, %s102
        $region80: #{tpu_custom_call.1} parent=76 // loop_header_branch
          %114 = sbr.rel (%p112) target = $region84
        $region81: #{tpu_custom_call.1} parent=76 // loop_body
          %v118 = vld [vmem:[%s116] sm:%s109]
          %119 = vst [vmem:[%s117] sm:%s109] %v118
        $region82: #{tpu_custom_call.1} parent=76 // loop_footer
          %s115 = sadd.s32 1, %s111
        $region83: #{tpu_custom_call.1} parent=76 // loop_footer_branch
          %110 = sbr.rel target = $region79
        $region84: #{tpu_custom_call.1} parent=76 // loop_exit
          _
      $region77: #{tpu_custom_call.1} parent=8 // pred_fallthru
        _
      // Predicated region
      $region96: #{tpu_custom_call.1} parent=8 // pred_check
        _
      $region97: #{tpu_custom_call.1} parent=8 // pred_check_branch
        %136 = sbr.rel (0) target = $region99
      $region98: #{tpu_custom_call.1} parent=8 // pred_region
        %137 = vsyncadd %s103, 16
      $region99: #{tpu_custom_call.1} parent=8 // pred_fallthru
        _
      %s138 = sadd.s32 %s19, 3
      %s139 = sld [smem:[#allocation5 + %s138]]
      %s140 = scalar_lea.vmem %s1, %s139
      %s141 = scalar_lea.vmem [#allocation2], 3
      %s142 = scalar_lea.sflag [#allocation3], 3
      // Predicated region
      $region100: #{tpu_custom_call.1} parent=8 // pred_check
        _
      $region101: #{tpu_custom_call.1} parent=8 // pred_check_branch
        %144 = sbr.rel target = $region103
      $region102: #{tpu_custom_call.1} parent=8 // pred_region
        // Predicated region
        $region115: #{tpu_custom_call.1} parent=102 // pred_check
          _
        $region116: #{tpu_custom_call.1} parent=102 // pred_check_branch
          %160 = sbr.rel (0) target = $region118
        $region117: #{tpu_custom_call.1} parent=102 // pred_region
          %s162 = ssub.s32 2, 1
          loop: start=0, step=1, limit=1
          $region119: #{tpu_custom_call.1} parent=117 // loop_pre_header
            _
          $region120: #{tpu_custom_call.1} parent=117 // loop_header
            %s164 = sphi 0, %s168
            %p165 = scmp.ge.s32.totalorder %s164, 1
            %s169 = sphi %s140, %s140
            %s170 = sphi %s141, %s141
          $region121: #{tpu_custom_call.1} parent=117 // loop_header_branch
            %167 = sbr.rel (%p165) target = $region125
          $region122: #{tpu_custom_call.1} parent=117 // loop_body
            %v171 = vld [vmem:[%s169] sm:%s162]
            %172 = vst [vmem:[%s170] sm:%s162] %v171
          $region123: #{tpu_custom_call.1} parent=117 // loop_footer
            %s168 = sadd.s32 1, %s164
          $region124: #{tpu_custom_call.1} parent=117 // loop_footer_branch
            %163 = sbr.rel target = $region120
          $region125: #{tpu_custom_call.1} parent=117 // loop_exit
            _
        $region118: #{tpu_custom_call.1} parent=102 // pred_fallthru
          _
      $region103: #{tpu_custom_call.1} parent=8 // pred_fallthru
        _
      // Predicated region
      $region104: #{tpu_custom_call.1} parent=8 // pred_check
        _
      $region105: #{tpu_custom_call.1} parent=8 // pred_check_branch
        %146 = sbr.rel (0) target = $region107
      $region106: #{tpu_custom_call.1} parent=8 // pred_region
        %s148 = ssub.s32 2, 1
        loop: start=0, step=1, limit=1
        $region108: #{tpu_custom_call.1} parent=106 // loop_pre_header
          _
        $region109: #{tpu_custom_call.1} parent=106 // loop_header
          %s150 = sphi 0, %s154
          %p151 = scmp.ge.s32.totalorder %s150, 1
          %s155 = sphi %s140, %s140
          %s156 = sphi %s141, %s141
        $region110: #{tpu_custom_call.1} parent=106 // loop_header_branch
          %153 = sbr.rel (%p151) target = $region114
        $region111: #{tpu_custom_call.1} parent=106 // loop_body
          %v157 = vld [vmem:[%s155] sm:%s148]
          %158 = vst [vmem:[%s156] sm:%s148] %v157
        $region112: #{tpu_custom_call.1} parent=106 // loop_footer
          %s154 = sadd.s32 1, %s150
        $region113: #{tpu_custom_call.1} parent=106 // loop_footer_branch
          %149 = sbr.rel target = $region109
        $region114: #{tpu_custom_call.1} parent=106 // loop_exit
          _
      $region107: #{tpu_custom_call.1} parent=8 // pred_fallthru
        _
      // Predicated region
      $region126: #{tpu_custom_call.1} parent=8 // pred_check
        _
      $region127: #{tpu_custom_call.1} parent=8 // pred_check_branch
        %175 = sbr.rel (0) target = $region129
      $region128: #{tpu_custom_call.1} parent=8 // pred_region
        %176 = vsyncadd %s142, 16
      $region129: #{tpu_custom_call.1} parent=8 // pred_fallthru
        _
      %s177 = sadd.s32 %s19, 4
      %s178 = sld [smem:[#allocation5 + %s177]]
      %s179 = scalar_lea.vmem %s1, %s178
      %s180 = scalar_lea.vmem [#allocation2], 4
      %s181 = scalar_lea.sflag [#allocation3], 4
      // Predicated region
      $region130: #{tpu_custom_call.1} parent=8 // pred_check
        _
      $region131: #{tpu_custom_call.1} parent=8 // pred_check_branch
        %183 = sbr.rel target = $region133
      $region132: #{tpu_custom_call.1} parent=8 // pred_region
        // Predicated region
        $region145: #{tpu_custom_call.1} parent=132 // pred_check
          _
        $region146: #{tpu_custom_call.1} parent=132 // pred_check_branch
          %199 = sbr.rel (0) target = $region148
        $region147: #{tpu_custom_call.1} parent=132 // pred_region
          %s201 = ssub.s32 2, 1
          loop: start=0, step=1, limit=1
          $region149: #{tpu_custom_call.1} parent=147 // loop_pre_header
            _
          $region150: #{tpu_custom_call.1} parent=147 // loop_header
            %s203 = sphi 0, %s207
            %p204 = scmp.ge.s32.totalorder %s203, 1
            %s208 = sphi %s179, %s179
            %s209 = sphi %s180, %s180
          $region151: #{tpu_custom_call.1} parent=147 // loop_header_branch
            %206 = sbr.rel (%p204) target = $region155
          $region152: #{tpu_custom_call.1} parent=147 // loop_body
            %v210 = vld [vmem:[%s208] sm:%s201]
            %211 = vst [vmem:[%s209] sm:%s201] %v210
          $region153: #{tpu_custom_call.1} parent=147 // loop_footer
            %s207 = sadd.s32 1, %s203
          $region154: #{tpu_custom_call.1} parent=147 // loop_footer_branch
            %202 = sbr.rel target = $region150
          $region155: #{tpu_custom_call.1} parent=147 // loop_exit
            _
        $region148: #{tpu_custom_call.1} parent=132 // pred_fallthru
          _
      $region133: #{tpu_custom_call.1} parent=8 // pred_fallthru
        _
      // Predicated region
      $region134: #{tpu_custom_call.1} parent=8 // pred_check
        _
      $region135: #{tpu_custom_call.1} parent=8 // pred_check_branch
        %185 = sbr.rel (0) target = $region137
      $region136: #{tpu_custom_call.1} parent=8 // pred_region
        %s187 = ssub.s32 2, 1
        loop: start=0, step=1, limit=1
        $region138: #{tpu_custom_call.1} parent=136 // loop_pre_header
          _
        $region139: #{tpu_custom_call.1} parent=136 // loop_header
          %s189 = sphi 0, %s193
          %p190 = scmp.ge.s32.totalorder %s189, 1
          %s194 = sphi %s179, %s179
          %s195 = sphi %s180, %s180
        $region140: #{tpu_custom_call.1} parent=136 // loop_header_branch
          %192 = sbr.rel (%p190) target = $region144
        $region141: #{tpu_custom_call.1} parent=136 // loop_body
          %v196 = vld [vmem:[%s194] sm:%s187]
          %197 = vst [vmem:[%s195] sm:%s187] %v196
        $region142: #{tpu_custom_call.1} parent=136 // loop_footer
          %s193 = sadd.s32 1, %s189
        $region143: #{tpu_custom_call.1} parent=136 // loop_footer_branch
          %188 = sbr.rel target = $region139
        $region144: #{tpu_custom_call.1} parent=136 // loop_exit
          _
      $region137: #{tpu_custom_call.1} parent=8 // pred_fallthru
        _
      // Predicated region
      $region156: #{tpu_custom_call.1} parent=8 // pred_check
        _
      $region157: #{tpu_custom_call.1} parent=8 // pred_check_branch
        %214 = sbr.rel (0) target = $region159
      $region158: #{tpu_custom_call.1} parent=8 // pred_region
        %215 = vsyncadd %s181, 16
      $region159: #{tpu_custom_call.1} parent=8 // pred_fallthru
        _
      %s216 = sadd.s32 %s19, 5
      %s217 = sld [smem:[#allocation5 + %s216]]
      %s218 = scalar_lea.vmem %s1, %s217
      %s219 = scalar_lea.vmem [#allocation2], 5
      %s220 = scalar_lea.sflag [#allocation3], 5
      // Predicated region
      $region160: #{tpu_custom_call.1} parent=8 // pred_check
        _
      $region161: #{tpu_custom_call.1} parent=8 // pred_check_branch
        %222 = sbr.rel target = $region163
      $region162: #{tpu_custom_call.1} parent=8 // pred_region
        // Predicated region
        $region175: #{tpu_custom_call.1} parent=162 // pred_check
          _
        $region176: #{tpu_custom_call.1} parent=162 // pred_check_branch
          %238 = sbr.rel (0) target = $region178
        $region177: #{tpu_custom_call.1} parent=162 // pred_region
          %s240 = ssub.s32 2, 1
          loop: start=0, step=1, limit=1
          $region179: #{tpu_custom_call.1} parent=177 // loop_pre_header
            _
          $region180: #{tpu_custom_call.1} parent=177 // loop_header
            %s242 = sphi 0, %s246
            %p243 = scmp.ge.s32.totalorder %s242, 1
            %s247 = sphi %s218, %s218
            %s248 = sphi %s219, %s219
          $region181: #{tpu_custom_call.1} parent=177 // loop_header_branch
            %245 = sbr.rel (%p243) target = $region185
          $region182: #{tpu_custom_call.1} parent=177 // loop_body
            %v249 = vld [vmem:[%s247] sm:%s240]
            %250 = vst [vmem:[%s248] sm:%s240] %v249
          $region183: #{tpu_custom_call.1} parent=177 // loop_footer
            %s246 = sadd.s32 1, %s242
          $region184: #{tpu_custom_call.1} parent=177 // loop_footer_branch
            %241 = sbr.rel target = $region180
          $region185: #{tpu_custom_call.1} parent=177 // loop_exit
            _
        $region178: #{tpu_custom_call.1} parent=162 // pred_fallthru
          _
      $region163: #{tpu_custom_call.1} parent=8 // pred_fallthru
        _
      // Predicated region
      $region164: #{tpu_custom_call.1} parent=8 // pred_check
        _
      $region165: #{tpu_custom_call.1} parent=8 // pred_check_branch
        %224 = sbr.rel (0) target = $region167
      $region166: #{tpu_custom_call.1} parent=8 // pred_region
        %s226 = ssub.s32 2, 1
        loop: start=0, step=1, limit=1
        $region168: #{tpu_custom_call.1} parent=166 // loop_pre_header
          _
        $region169: #{tpu_custom_call.1} parent=166 // loop_header
          %s228 = sphi 0, %s232
          %p229 = scmp.ge.s32.totalorder %s228, 1
          %s233 = sphi %s218, %s218
          %s234 = sphi %s219, %s219
        $region170: #{tpu_custom_call.1} parent=166 // loop_header_branch
          %231 = sbr.rel (%p229) target = $region174
        $region171: #{tpu_custom_call.1} parent=166 // loop_body
          %v235 = vld [vmem:[%s233] sm:%s226]
          %236 = vst [vmem:[%s234] sm:%s226] %v235
        $region172: #{tpu_custom_call.1} parent=166 // loop_footer
          %s232 = sadd.s32 1, %s228
        $region173: #{tpu_custom_call.1} parent=166 // loop_footer_branch
          %227 = sbr.rel target = $region169
        $region174: #{tpu_custom_call.1} parent=166 // loop_exit
          _
      $region167: #{tpu_custom_call.1} parent=8 // pred_fallthru
        _
      // Predicated region
      $region186: #{tpu_custom_call.1} parent=8 // pred_check
        _
      $region187: #{tpu_custom_call.1} parent=8 // pred_check_branch
        %253 = sbr.rel (0) target = $region189
      $region188: #{tpu_custom_call.1} parent=8 // pred_region
        %254 = vsyncadd %s220, 16
      $region189: #{tpu_custom_call.1} parent=8 // pred_fallthru
        _
      %s255 = sadd.s32 %s19, 6
      %s256 = sld [smem:[#allocation5 + %s255]]
      %s257 = scalar_lea.vmem %s1, %s256
      %s258 = scalar_lea.vmem [#allocation2], 6
      %s259 = scalar_lea.sflag [#allocation3], 6
      // Predicated region
      $region190: #{tpu_custom_call.1} parent=8 // pred_check
        _
      $region191: #{tpu_custom_call.1} parent=8 // pred_check_branch
        %261 = sbr.rel target = $region193
      $region192: #{tpu_custom_call.1} parent=8 // pred_region
        // Predicated region
        $region205: #{tpu_custom_call.1} parent=192 // pred_check
          _
        $region206: #{tpu_custom_call.1} parent=192 // pred_check_branch
          %277 = sbr.rel (0) target = $region208
        $region207: #{tpu_custom_call.1} parent=192 // pred_region
          %s279 = ssub.s32 2, 1
          loop: start=0, step=1, limit=1
          $region209: #{tpu_custom_call.1} parent=207 // loop_pre_header
            _
          $region210: #{tpu_custom_call.1} parent=207 // loop_header
            %s281 = sphi 0, %s285
            %p282 = scmp.ge.s32.totalorder %s281, 1
            %s286 = sphi %s257, %s257
            %s287 = sphi %s258, %s258
          $region211: #{tpu_custom_call.1} parent=207 // loop_header_branch
            %284 = sbr.rel (%p282) target = $region215
          $region212: #{tpu_custom_call.1} parent=207 // loop_body
            %v288 = vld [vmem:[%s286] sm:%s279]
            %289 = vst [vmem:[%s287] sm:%s279] %v288
          $region213: #{tpu_custom_call.1} parent=207 // loop_footer
            %s285 = sadd.s32 1, %s281
          $region214: #{tpu_custom_call.1} parent=207 // loop_footer_branch
            %280 = sbr.rel target = $region210
          $region215: #{tpu_custom_call.1} parent=207 // loop_exit
            _
        $region208: #{tpu_custom_call.1} parent=192 // pred_fallthru
          _
      $region193: #{tpu_custom_call.1} parent=8 // pred_fallthru
        _
      // Predicated region
      $region194: #{tpu_custom_call.1} parent=8 // pred_check
        _
      $region195: #{tpu_custom_call.1} parent=8 // pred_check_branch
        %263 = sbr.rel (0) target = $region197
      $region196: #{tpu_custom_call.1} parent=8 // pred_region
        %s265 = ssub.s32 2, 1
        loop: start=0, step=1, limit=1
        $region198: #{tpu_custom_call.1} parent=196 // loop_pre_header
          _
        $region199: #{tpu_custom_call.1} parent=196 // loop_header
          %s267 = sphi 0, %s271
          %p268 = scmp.ge.s32.totalorder %s267, 1
          %s272 = sphi %s257, %s257
          %s273 = sphi %s258, %s258
        $region200: #{tpu_custom_call.1} parent=196 // loop_header_branch
          %270 = sbr.rel (%p268) target = $region204
        $region201: #{tpu_custom_call.1} parent=196 // loop_body
          %v274 = vld [vmem:[%s272] sm:%s265]
          %275 = vst [vmem:[%s273] sm:%s265] %v274
        $region202: #{tpu_custom_call.1} parent=196 // loop_footer
          %s271 = sadd.s32 1, %s267
        $region203: #{tpu_custom_call.1} parent=196 // loop_footer_branch
          %266 = sbr.rel target = $region199
        $region204: #{tpu_custom_call.1} parent=196 // loop_exit
          _
      $region197: #{tpu_custom_call.1} parent=8 // pred_fallthru
        _
      // Predicated region
      $region216: #{tpu_custom_call.1} parent=8 // pred_check
        _
      $region217: #{tpu_custom_call.1} parent=8 // pred_check_branch
        %292 = sbr.rel (0) target = $region219
      $region218: #{tpu_custom_call.1} parent=8 // pred_region
        %293 = vsyncadd %s259, 16
      $region219: #{tpu_custom_call.1} parent=8 // pred_fallthru
        _
      %s294 = sadd.s32 %s19, 7
      %s295 = sld [smem:[#allocation5 + %s294]]
      %s296 = scalar_lea.vmem %s1, %s295
      %s297 = scalar_lea.vmem [#allocation2], 7
      %s298 = scalar_lea.sflag [#allocation3], 7
      // Predicated region
      $region220: #{tpu_custom_call.1} parent=8 // pred_check
        _
      $region221: #{tpu_custom_call.1} parent=8 // pred_check_branch
        %300 = sbr.rel target = $region223
      $region222: #{tpu_custom_call.1} parent=8 // pred_region
        // Predicated region
        $region235: #{tpu_custom_call.1} parent=222 // pred_check
          _
        $region236: #{tpu_custom_call.1} parent=222 // pred_check_branch
          %316 = sbr.rel (0) target = $region238
        $region237: #{tpu_custom_call.1} parent=222 // pred_region
          %s318 = ssub.s32 2, 1
          loop: start=0, step=1, limit=1
          $region239: #{tpu_custom_call.1} parent=237 // loop_pre_header
            _
          $region240: #{tpu_custom_call.1} parent=237 // loop_header
            %s320 = sphi 0, %s324
            %p321 = scmp.ge.s32.totalorder %s320, 1
            %s325 = sphi %s296, %s296
            %s326 = sphi %s297, %s297
          $region241: #{tpu_custom_call.1} parent=237 // loop_header_branch
            %323 = sbr.rel (%p321) target = $region245
          $region242: #{tpu_custom_call.1} parent=237 // loop_body
            %v327 = vld [vmem:[%s325] sm:%s318]
            %328 = vst [vmem:[%s326] sm:%s318] %v327
          $region243: #{tpu_custom_call.1} parent=237 // loop_footer
            %s324 = sadd.s32 1, %s320
          $region244: #{tpu_custom_call.1} parent=237 // loop_footer_branch
            %319 = sbr.rel target = $region240
          $region245: #{tpu_custom_call.1} parent=237 // loop_exit
            _
        $region238: #{tpu_custom_call.1} parent=222 // pred_fallthru
          _
      $region223: #{tpu_custom_call.1} parent=8 // pred_fallthru
        _
      // Predicated region
      $region224: #{tpu_custom_call.1} parent=8 // pred_check
        _
      $region225: #{tpu_custom_call.1} parent=8 // pred_check_branch
        %302 = sbr.rel (0) target = $region227
      $region226: #{tpu_custom_call.1} parent=8 // pred_region
        %s304 = ssub.s32 2, 1
        loop: start=0, step=1, limit=1
        $region228: #{tpu_custom_call.1} parent=226 // loop_pre_header
          _
        $region229: #{tpu_custom_call.1} parent=226 // loop_header
          %s306 = sphi 0, %s310
          %p307 = scmp.ge.s32.totalorder %s306, 1
          %s311 = sphi %s296, %s296
          %s312 = sphi %s297, %s297
        $region230: #{tpu_custom_call.1} parent=226 // loop_header_branch
          %309 = sbr.rel (%p307) target = $region234
        $region231: #{tpu_custom_call.1} parent=226 // loop_body
          %v313 = vld [vmem:[%s311] sm:%s304]
          %314 = vst [vmem:[%s312] sm:%s304] %v313
        $region232: #{tpu_custom_call.1} parent=226 // loop_footer
          %s310 = sadd.s32 1, %s306
        $region233: #{tpu_custom_call.1} parent=226 // loop_footer_branch
          %305 = sbr.rel target = $region229
        $region234: #{tpu_custom_call.1} parent=226 // loop_exit
          _
      $region227: #{tpu_custom_call.1} parent=8 // pred_fallthru
        _
      // Predicated region
      $region246: #{tpu_custom_call.1} parent=8 // pred_check
        _
      $region247: #{tpu_custom_call.1} parent=8 // pred_check_branch
        %331 = sbr.rel (0) target = $region249
      $region248: #{tpu_custom_call.1} parent=8 // pred_region
        %332 = vsyncadd %s298, 16
      $region249: #{tpu_custom_call.1} parent=8 // pred_fallthru
        _
      loop: start=0, step=1, limit=16
      $region250: #{tpu_custom_call.1} parent=8 // loop_pre_header
        _
      $region251: #{tpu_custom_call.1} parent=8 // loop_header
        %s334 = sphi 0, %s338
        %p335 = scmp.ge.s32.totalorder %s334, 16
      $region252: #{tpu_custom_call.1} parent=8 // loop_header_branch
        %337 = sbr.rel (%p335) target = $region256
      $region253: #{tpu_custom_call.1} parent=8 // loop_body
        %p339 = scmp.lt.s32.totalorder %s334, 0
        %s340 = ssub.s32 0, %s334
        %s341 = scalar_select %p339, %s340, %s334
        %s342 = sand.u32 %s341, 7
        %s343 = ssub.s32 0, %s342
        %s344 = scalar_select %p339, %s343, %s342
        %p345 = scmp.ne.s32.totalorder %s344, 0
        %p346 = scmp.lt.s32.totalorder %s344, 0
        %p347 = pnand %p346, %p345
        %p348 = pneg %p347
        %s349 = sadd.s32 %s344, 8
        %s350 = scalar_select %p348, %s349, %s344
        %s351 = sadd.s32 %s19, %s334
        %s352 = sld [smem:[#allocation5 + %s351]]
        %s353 = scalar_lea.sflag [#allocation3], %s350
        %s354 = smul.u32 1, 1
        %s355 = sshll.u32 %s354, 4
        %356 = dma.done %s353, %s355
        %s357 = sadd.s32 %s334, 8
        %p358 = scmp.lt.s32.totalorder %s357, 16
        // Predicated region
        $region257: #{tpu_custom_call.1} parent=253 // pred_check
          %p359 = pneg %p358
        $region258: #{tpu_custom_call.1} parent=253 // pred_check_branch
          %361 = sbr.rel (%p359) target = $region260
        $region259: #{tpu_custom_call.1} parent=253 // pred_region
          %s362 = sadd.s32 %s19, %s357
          %s363 = sld [smem:[#allocation5 + %s362]]
          %s364 = scalar_lea.vmem %s1, %s363
          %s365 = scalar_lea.vmem [#allocation2], %s357
          // Predicated region
          $region261: #{tpu_custom_call.1} parent=259 // pred_check
            _
          $region262: #{tpu_custom_call.1} parent=259 // pred_check_branch
            %367 = sbr.rel target = $region264
          $region263: #{tpu_custom_call.1} parent=259 // pred_region
            // Predicated region
            $region276: #{tpu_custom_call.1} parent=263 // pred_check
              _
            $region277: #{tpu_custom_call.1} parent=263 // pred_check_branch
              %383 = sbr.rel (0) target = $region279
            $region278: #{tpu_custom_call.1} parent=263 // pred_region
              %s385 = ssub.s32 2, 1
              loop: start=0, step=1, limit=1
              $region280: #{tpu_custom_call.1} parent=278 // loop_pre_header
                _
              $region281: #{tpu_custom_call.1} parent=278 // loop_header
                %s387 = sphi 0, %s391
                %p388 = scmp.ge.s32.totalorder %s387, 1
                %s392 = sphi %s364, %s364
                %s393 = sphi %s365, %s365
              $region282: #{tpu_custom_call.1} parent=278 // loop_header_branch
                %390 = sbr.rel (%p388) target = $region286
              $region283: #{tpu_custom_call.1} parent=278 // loop_body
                %v394 = vld [vmem:[%s392] sm:%s385]
                %395 = vst [vmem:[%s393] sm:%s385] %v394
              $region284: #{tpu_custom_call.1} parent=278 // loop_footer
                %s391 = sadd.s32 1, %s387
              $region285: #{tpu_custom_call.1} parent=278 // loop_footer_branch
                %386 = sbr.rel target = $region281
              $region286: #{tpu_custom_call.1} parent=278 // loop_exit
                _
            $region279: #{tpu_custom_call.1} parent=263 // pred_fallthru
              _
          $region264: #{tpu_custom_call.1} parent=259 // pred_fallthru
            _
          // Predicated region
          $region265: #{tpu_custom_call.1} parent=259 // pred_check
            _
          $region266: #{tpu_custom_call.1} parent=259 // pred_check_branch
            %369 = sbr.rel (0) target = $region268
          $region267: #{tpu_custom_call.1} parent=259 // pred_region
            %s371 = ssub.s32 2, 1
            loop: start=0, step=1, limit=1
            $region269: #{tpu_custom_call.1} parent=267 // loop_pre_header
              _
            $region270: #{tpu_custom_call.1} parent=267 // loop_header
              %s373 = sphi 0, %s377
              %p374 = scmp.ge.s32.totalorder %s373, 1
              %s378 = sphi %s364, %s364
              %s379 = sphi %s365, %s365
            $region271: #{tpu_custom_call.1} parent=267 // loop_header_branch
              %376 = sbr.rel (%p374) target = $region275
            $region272: #{tpu_custom_call.1} parent=267 // loop_body
              %v380 = vld [vmem:[%s378] sm:%s371]
              %381 = vst [vmem:[%s379] sm:%s371] %v380
            $region273: #{tpu_custom_call.1} parent=267 // loop_footer
              %s377 = sadd.s32 1, %s373
            $region274: #{tpu_custom_call.1} parent=267 // loop_footer_branch
              %372 = sbr.rel target = $region270
            $region275: #{tpu_custom_call.1} parent=267 // loop_exit
              _
          $region268: #{tpu_custom_call.1} parent=259 // pred_fallthru
            _
          // Predicated region
          $region287: #{tpu_custom_call.1} parent=259 // pred_check
            _
          $region288: #{tpu_custom_call.1} parent=259 // pred_check_branch
            %398 = sbr.rel (0) target = $region290
          $region289: #{tpu_custom_call.1} parent=259 // pred_region
            %399 = vsyncadd %s353, 16
          $region290: #{tpu_custom_call.1} parent=259 // pred_fallthru
            _
        $region260: #{tpu_custom_call.1} parent=253 // pred_fallthru
          _
      $region254: #{tpu_custom_call.1} parent=8 // loop_footer
        %s338 = sadd.s32 1, %s334
      $region255: #{tpu_custom_call.1} parent=8 // loop_footer_branch
        %333 = sbr.rel target = $region251
      $region256: #{tpu_custom_call.1} parent=8 // loop_exit
        _
    $region9: #{tpu_custom_call.1} parent=1 // pred_fallthru
      _
    %v400 = vld [vmem:[#allocation2] sm:$0xff]
    %v401 = vld [vmem:[#allocation2 + $0x8] sm:$0xff]
    %v402 = vld [vmem:[%s2] sm:$0xff]
    %v403 = vld [vmem:[%s2 + $0x8] sm:$0xff]
    %vm404 = vcmask 130048
    %v406 = vsel %vm404, %v400, 0
    %v409 = vsel %vm404, %v401, 0
    %411 = vmatpush.msra.mxu0 0.0
    %412 = vmatpush.msra.mxu0 0.0
    %413 = vmatpush.msra.mxu0 0.0
    %414 = vmatpush.msra.mxu0 0.0
    %415 = vmatpush.msra.mxu0 0.0
    %416 = vmatpush.msra.mxu0 0.0
    %417 = vmatpush.msra.mxu0 0.0
    %418 = vmatpush.msra.mxu0 0.0
    %419 = vmatpush.msra.mxu0 0.0
    %420 = vmatpush.msra.mxu0 0.0
    %421 = vmatpush.msra.mxu0 0.0
    %422 = vmatpush.msra.mxu0 0.0
    %423 = vmatpush.msra.mxu0 0.0
    %424 = vmatpush.msra.mxu0 0.0
    %425 = vmatpush.msra.mxu0 %v403
    %426 = vmatpush.msra.mxu0 %v402
    %427 = vmatmul.f32.gmra.mxu0 %v406
    %v428 = vpop.f32.mrf.mxu0
    %v429 = vadd.f32 0.0, %v428
    %430 = vmatmul.f32.gmra.mxu0 %v409
    %v431 = vpop.f32.mrf.mxu0
    %v432 = vadd.f32 0.0, %v431
    %433 = vdwg.mxu0
    %vm434 = vcmask 261120
    %435 = vst.msk [vmem:[#allocation6] sm:$0xff] %vm434, %v429
    %436 = vst.msk [vmem:[#allocation6 + $0x8] sm:$0xff] %vm434, %v432
    // Predicated region
    $region291: #{tpu_custom_call.1} parent=1 // pred_check
      _
    $region292: #{tpu_custom_call.1} parent=1 // pred_check_branch
      %438 = sbr.rel (0) target = $region294
    $region293: #{tpu_custom_call.1} parent=1 // pred_region
      %440 = vsyncadd [#allocation7], 0
      %s441 = sshll.u32 [#allocation6], 4
      %s442 = int_to_ptr.vmem [resolvable:$true] %s441
      %s443 = sshll.u32 %s3, 4
      %s444 = int_to_ptr.hbm [resolvable:$true] %s443
      %449 = dma.vmem_to_hbm [thread:$0]  %s442, 256, %s444, [#allocation7], 128, 128, 8
    $region294: #{tpu_custom_call.1} parent=1 // pred_fallthru
      _
    // Predicated region
    $region295: #{tpu_custom_call.1} parent=1 // pred_check
      _
    $region296: #{tpu_custom_call.1} parent=1 // pred_check_branch
      %451 = sbr.rel (0) target = $region298
    $region297: #{tpu_custom_call.1} parent=1 // pred_region
      %453 = dma.done [#allocation7], 256
    $region298: #{tpu_custom_call.1} parent=1 // pred_fallthru
      _
    %454 = vsyncpa [#allocation7], 1
  %455 = vsyncmov [#allocation3]
  %s456 = vpop.sfrf %455
  %p457 = scmp.eq.s32.totalorder %s456, 0
  %p458 = pneg %p457
  %460 = shalt.err (%p458)
  %s461 = scalar_lea.sflag [#allocation3], 1
  %462 = vsyncmov %s461
  %s463 = vpop.sfrf %462
  %p464 = scmp.eq.s32.totalorder %s463, 0
  %p465 = pneg %p464
  %467 = shalt.err (%p465)
  %s468 = scalar_lea.sflag [#allocation3], 2
  %469 = vsyncmov %s468
  %s470 = vpop.sfrf %469
  %p471 = scmp.eq.s32.totalorder %s470, 0
  %p472 = pneg %p471
  %474 = shalt.err (%p472)
  %s475 = scalar_lea.sflag [#allocation3], 3
  %476 = vsyncmov %s475
  %s477 = vpop.sfrf %476
  %p478 = scmp.eq.s32.totalorder %s477, 0
  %p479 = pneg %p478
  %481 = shalt.err (%p479)
  %s482 = scalar_lea.sflag [#allocation3], 4
  %483 = vsyncmov %s482
  %s484 = vpop.sfrf %483
  %p485 = scmp.eq.s32.totalorder %s484, 0
  %p486 = pneg %p485
  %488 = shalt.err (%p486)
  %s489 = scalar_lea.sflag [#allocation3], 5
  %490 = vsyncmov %s489
  %s491 = vpop.sfrf %490
  %p492 = scmp.eq.s32.totalorder %s491, 0
  %p493 = pneg %p492
  %495 = shalt.err (%p493)
  %s496 = scalar_lea.sflag [#allocation3], 6
  %497 = vsyncmov %s496
  %s498 = vpop.sfrf %497
  %p499 = scmp.eq.s32.totalorder %s498, 0
  %p500 = pneg %p499
  %502 = shalt.err (%p500)
  %s503 = scalar_lea.sflag [#allocation3], 7
  %504 = vsyncmov %s503
  %s505 = vpop.sfrf %504
  %p506 = scmp.eq.s32.totalorder %s505, 0
  %p507 = pneg %p506
  %509 = shalt.err (%p507)

</llo_original>
